<compile_context>
chip_gen: v6e
topology: v6e:2x2x1
jax: 0.10.0
libtpu: 0.0.40
codegen_flags: <defaults>
</compile_context>

<pallas_src>
import functools

import jax
import jax.numpy as jnp
from jax.experimental import pallas as pl
from jax.experimental.pallas import tpu as pltpu


def _copy_kernel(x_ref, o_ref):
    # Whole-tile copy.  The grid only covers time blocks inside [0, L_out), so
    # every full interior tile is an unmasked lane-dense store; Pallas masks
    # the stores of the (at most one) ragged edge tile per axis.
    o_ref[...] = x_ref[...]


def _round_up(x: int, m: int) -> int:
    return ((x + m - 1) // m) * m


def _sublane_multiple(dtype) -> int:
    # Native sublane packing: 8 rows for 4-byte, 16 for 2-byte, 32 for 1-byte.
    return {4: 8, 2: 16, 1: 32}.get(jnp.dtype(dtype).itemsize, 8)


def _per_tile_budget_bytes() -> int:
    budget = 4 * 1024 * 1024  # safe + near-roofline on v5e / v6e / v7x
    try:
        vmem = getattr(pltpu.get_tpu_info(), "vmem_capacity_bytes", 0)
        if vmem and vmem >= 128 * 1024 * 1024:
            budget = 8 * 1024 * 1024  # v5e/v6e: ample VMEM headroom
    except Exception:
        pass
    return budget


_TILE_BUDGET = _per_tile_budget_bytes()
_VMEM_LIMIT = (32 if _TILE_BUDGET <= 4 * 1024 * 1024 else 64) * 1024 * 1024


@functools.partial(jax.jit, static_argnames=("chomp_size",))
def chomp1d(x: jax.Array, chomp_size: int) -> jax.Array:
    """Equivalent of PyTorch Chomp1d(chomp_size)(x) for x of shape (N, C, L)."""
    assert x.ndim == 3, "expected (N, C, L)"
    n, c, l = x.shape

    # Match PyTorch x[:, :, :-chomp_size] exactly, including the chomp_size==0
    # quirk (':-0' == ':0' -> empty) and clamping when chomp_size >= L.
    l_out = max(l - chomp_size, 0) if chomp_size > 0 else 0

    # Fast paths where a Pallas launch cannot win: degenerate output, or
    # shapes below one (8, 128) tile (masked partial stores + launch overhead
    # would dominate) -> plain XLA slice.
    rows = n * c
    if l_out == 0 or rows < 8 or l_out < 128:
        return x[:, :, :l_out]

    # Collapse batch and channel into one row axis (free for contiguous NCL);
    # time stays the lane (last) axis.
    x2 = x.reshape(rows, l)

    itemsize = jnp.dtype(x.dtype).itemsize
    sub = _sublane_multiple(x.dtype)

    # Byte-budgeted tiles, lane axis first.
    l_pad = _round_up(l_out, 128)
    max_l = max(128, (_TILE_BUDGET // (sub * itemsize)) // 128 * 128)
    tile_l = min(l_pad, max_l)

    rows_pad = _round_up(rows, sub)
    max_r = max(sub, (_TILE_BUDGET // (tile_l * itemsize)) // sub * sub)
    tile_r = min(rows_pad, max_r)

    # Keep >= 2 row tiles when the row count allows it so both of v7x's
    # TensorCores get work (one extra ~0.35 us grid step on 1-TC chips).
    if tile_r >= rows_pad and rows_pad >= 2 * sub:
        tile_r = _round_up(rows_pad // 2, sub)

    grid = (pl.cdiv(rows, tile_r), pl.cdiv(l_out, tile_l))

    out2 = pl.pallas_call(
        _copy_kernel,
        out_shape=jax.ShapeDtypeStruct((rows, l_out), x.dtype),
        grid=grid,
        # Identical blocks / index maps for input and output: the grid only
        # indexes time blocks covering [0, l_out), so apart from the single
        # ragged edge block's padding the chomped tail is never touched.
        in_specs=[pl.BlockSpec((tile_r, tile_l), lambda i, j: (i, j))],
        out_specs=pl.BlockSpec((tile_r, tile_l), lambda i, j: (i, j)),
        compiler_params=pltpu.CompilerParams(
            # Pure copy: every grid point is independent -> both axes parallel.
            dimension_semantics=("parallel", "parallel"),
            vmem_limit_bytes=_VMEM_LIMIT,
        ),
    )(x2)

    return out2.reshape(n, c, l_out)


if __name__ == "__main__":
    key = jax.random.PRNGKey(0)
    k1, k2, k3 = jax.random.split(key, 3)

    # 1) Main case: exercises the Pallas kernel path (rows >= 8, l_out >= 128).
    N, C, L, chomp = 2, 8, 256, 3
    x = jax.random.normal(k1, (N, C, L), dtype=jnp.float32)
    out = jax.block_until_ready(chomp1d(x, chomp))
    assert out.shape == (N, C, L - chomp), out.shape
    assert jnp.array_equal(out, x[:, :, :-chomp]), "f32 mismatch vs reference"

    # 2) bf16 case: checks the dtype-aware (byte-budget) tiling path.
    xb = jax.random.normal(k2, (2, 16, 384), dtype=jnp.bfloat16)
    outb = jax.block_until_ready(chomp1d(xb, 3))
    assert jnp.array_equal(outb, xb[:, :, :-3]), "bf16 mismatch vs reference"

    # 3) Tiny case (original demo shape): goes through the XLA-slice fast path.
    xs = jax.random.normal(k3, (2, 4, 16), dtype=jnp.float32)
    outs = jax.block_until_ready(chomp1d(xs, 3))
    assert outs.shape == (2, 4, 13)
    assert jnp.array_equal(outs, xs[:, :, :-3]), "tiny-shape mismatch"

    print("KERNEL_OK")
</pallas_src>

<mosaic_0001>
module attributes {stable_mosaic.version = 11 : i64} {
  func.func @_copy_kernel(%arg0: i32, %arg1: i32, %arg2: memref<8x256xf32, #tpu.memory_space<vmem>>, %arg3: memref<8x256xf32, #tpu.memory_space<vmem>>) attributes {dimension_semantics = [#tpu.dimension_semantics<parallel>, #tpu.dimension_semantics<parallel>], iteration_bounds = array<i64: 2, 1>, scalar_prefetch = 0 : i64, scratch_operands = 0 : i64, tpu.core_type = #tpu.core_type<tc>, window_params = [{transform_indices = @transform_0, window_bounds = array<i64: 8, 256>}, {transform_indices = @transform_1, window_bounds = array<i64: 8, 256>}]} {
    %c0 = arith.constant 0 : index
    %c0_0 = arith.constant 0 : index
    %0 = vector.load %arg2[%c0, %c0_0] : memref<8x256xf32, #tpu.memory_space<vmem>>, vector<8x256xf32>
    %c0_1 = arith.constant 0 : index
    %c0_2 = arith.constant 0 : index
    %1 = vector.load %arg3[%c0_1, %c0_2] : memref<8x256xf32, #tpu.memory_space<vmem>>, vector<8x256xf32>
    tpu.vector_store %arg3[%c0_1, %c0_2], %0 {strides = array<i32>} : memref<8x256xf32, #tpu.memory_space<vmem>>, vector<8x256xf32>,
    return
  }
  func.func @transform_0(%arg0: i32, %arg1: i32) -> (i32, i32) {
    %c0_i32 = arith.constant 0 : i32
    return %arg0, %arg1 : i32, i32
  }
  func.func @transform_1(%arg0: i32, %arg1: i32) -> (i32, i32) {
    %c0_i32 = arith.constant 0 : i32
    return %arg0, %arg1 : i32, i32
  }
}

</mosaic_0001>

<llo_original>
// kernel: chomp1d.1
$region0: #{chomp1d.1}
  #allocation0 [shape = 'u32[]', space=smem, size = 0x4, offset = 0x4, fixed_abs, tag = 'smem constant byte address 0x4 - core index']
  #allocation1 [shape = 'u32[144,128]{1,0:T(1,128)}', space=vmem, size = 0x12000, scoped, tag = 'internal scratch']
  %s0 = inlined_call_operand.hbm [shape: f32[16,256], index: 0, kind: input, shape index: {}]
  %s1 = inlined_call_operand.hbm [shape: f32[16,253], index: 1, kind: output, shape index: {}]
  %s2 = sld [smem:[#allocation0]]
  $region41: #{chomp1d.1} parent=0
    _
  %s4 = ssub.s32 1, %s2
  %s5 = scalar_select 0, %s4, %s2
  $region1: #{chomp1d.1} parent=0
    #allocation2 [shape = 'u8[16384]{0}', space=vmem, size = 0x4000, scoped, tag = 'input window, operand 0']
    #allocation3 [shape = 's32[2]{0}', space=sflag, size = 0x8, scoped, tag = 'scoped memory for chomp1d.1']
    #allocation4 [shape = 's32[2]{0}', space=sflag, size = 0x8, scoped, tag = 'scoped memory for chomp1d.1']
    #allocation5 [shape = 'u8[16384]{0}', space=vmem, size = 0x4000, scoped, tag = 'output window, operand 0']
    %6 = vsyncpa [#allocation3], 0
    %s7 = scalar_lea.sflag [#allocation3], 1
    %8 = vsyncpa %s7, 0
    %9 = vsyncpa [#allocation4], 0
    %s10 = scalar_lea.sflag [#allocation4], 1
    %11 = vsyncpa %s10, 0
    loop: start=0, step=1, limit=4
    $region2: #{chomp1d.1} parent=1 // loop_pre_header
      _
    $region3: #{chomp1d.1} parent=1 // loop_header
      %s13 = sphi 0, %s17
      %p14 = scmp.ge.s32.totalorder %s13, 4
      %s20 = sphi 0, %s32
      %s21 = sphi 0, %s28
      %s22 = sphi 0, %s20
      %s23 = sphi 0, %s21
      %s24 = sphi 0, %s22
      %s25 = sphi 0, %s23
      %s37 = sphi 0, %s39
      %s40 = sphi 0, %s37
      %s41 = sphi 0, %s40
      %s57 = sphi 0, %s41
      %s65 = sphi 0, %s67
      %s68 = sphi 0, %s65
      %s69 = sphi 0, %s68
      %s85 = sphi 0, %s69
    $region4: #{chomp1d.1} parent=1 // loop_header_branch
      %16 = sbr.rel (%p14) target = $region8
    $region5: #{chomp1d.1} parent=1 // loop_body
      %s18 = ssub.s32 %s13, 1
      %s19 = ssub.s32 %s13, 2
      %s26 = sadd.s32 1, %s21
      %p27 = scmp.ge.s32.totalorder %s26, 1
      %s28 = scalar_select %p27, 0, %s26
      %s29 = sadd.s32 1, %s20
      %s30 = scalar_select %p27, %s29, %s20
      %p31 = scmp.ge.s32.totalorder %s30, 2
      %s32 = scalar_select %p31, 0, %s30
      %s33 = ssub.s32 %s20, %s32
      %s34 = ssub.s32 %s21, %s28
      %s35 = sor.u32 %s33, %s34
      %p36 = scmp.eq.s32.totalorder %s35, 0
      %s38 = sadd.s32 %s37, 1
      %s39 = scalar_select %p36, %s37, %s38
      %p42 = pneg %p36
      %p43 = scmp.eq.s32.totalorder %s13, 1
      %p44 = por %p42, %p43
      %p45 = scmp.ne.s32.totalorder %s37, %s40
      %p46 = scmp.eq.s32.totalorder %s13, 0
      %p47 = por %p45, %p46
      %p48 = scmp.ne.s32.totalorder %s37, %s40
      %p49 = scmp.eq.s32.totalorder %s18, 1
      %p50 = por %p48, %p49
      %p51 = scmp.ne.s32.totalorder %s40, %s41
      %p52 = scmp.eq.s32.totalorder %s18, 0
      %p53 = por %p51, %p52
      %p54 = scmp.ne.s32.totalorder %s40, %s41
      %p55 = scmp.eq.s32.totalorder %s19, 1
      %p56 = por %p54, %p55
      %p58 = scmp.ne.s32.totalorder %s41, %s57
      %p59 = scmp.eq.s32.totalorder %s19, 0
      %p60 = por %p58, %p59
      %s61 = ssub.s32 %s20, %s32
      %s62 = ssub.s32 %s21, %s28
      %s63 = sor.u32 %s61, %s62
      %p64 = scmp.eq.s32.totalorder %s63, 0
      %s66 = sadd.s32 %s65, 1
      %s67 = scalar_select %p64, %s65, %s66
      %p70 = pneg %p64
      %p71 = scmp.eq.s32.totalorder %s13, 1
      %p72 = por %p70, %p71
      %p73 = scmp.ne.s32.totalorder %s65, %s68
      %p74 = scmp.eq.s32.totalorder %s13, 0
      %p75 = por %p73, %p74
      %p76 = scmp.ne.s32.totalorder %s65, %s68
      %p77 = scmp.eq.s32.totalorder %s18, 1
      %p78 = por %p76, %p77
      %p79 = scmp.ne.s32.totalorder %s68, %s69
      %p80 = scmp.eq.s32.totalorder %s18, 0
      %p81 = por %p79, %p80
      %p82 = scmp.ne.s32.totalorder %s68, %s69
      %p83 = scmp.eq.s32.totalorder %s19, 1
      %p84 = por %p82, %p83
      %p86 = scmp.ne.s32.totalorder %s69, %s85
      %p87 = scmp.eq.s32.totalorder %s19, 0
      %p88 = por %p86, %p87
      %p89 = scmp.le.s32.totalorder 1, %s13
      %p90 = scmp.lt.s32.totalorder %s13, 3
      %p91 = pnand %p89, %p90
      %p92 = pneg %p91
      // Predicated region
      $region9: #{chomp1d.1} parent=5 // pred_check
        _
      $region10: #{chomp1d.1} parent=5 // pred_check_branch
        %94 = sbr.rel (%p91) target = $region12
      $region11: #{chomp1d.1} parent=5 // pred_region
        %s95 = ssub.s32 %s13, 1
      $region12: #{chomp1d.1} parent=5 // pred_fallthru
        _
      %p96 = scmp.lt.s32.totalorder %s13, 2
      // Predicated region
      $region13: #{chomp1d.1} parent=5 // pred_check
        %p97 = pneg %p96
      $region14: #{chomp1d.1} parent=5 // pred_check_branch
        %99 = sbr.rel (%p97) target = $region16
      $region15: #{chomp1d.1} parent=5 // pred_region
        // Predicated region
        $region17: #{chomp1d.1} parent=15 // pred_check
          %p100 = pneg %p47
        $region18: #{chomp1d.1} parent=15 // pred_check_branch
          %102 = sbr.rel (%p100) target = $region20
        $region19: #{chomp1d.1} parent=15 // pred_region
          %s103 = sand.u32 %s37, 1
          %s104 = scalar_lea.sflag [#allocation3], %s103
          %s105 = sand.u32 %s37, 1
          %s106 = smul.addr %s105, 16
          %s107 = scalar_lea.vmem [#allocation2], %s106
          %s108 = smul.u32 2, %s21
          %s110 = ssub.s32 256, 256
          %111 = vsyncadd %s104, %s110
          %s112 = smul.addr %s20, 2
          %s113 = sadd.s32 %s108, %s112
          %s114 = smul.addr %s113, 128
          %s115 = scalar_lea.hbm %s0, %s114
          %s117 = sshll.u32 %s107, 4
          %s118 = int_to_ptr.vmem [resolvable:$true] %s117
          %120 = dma.hbm_to_vmem [thread:$0]  %s115, 256, %s118, %s104
        $region20: #{chomp1d.1} parent=15 // pred_fallthru
          _
      $region16: #{chomp1d.1} parent=5 // pred_fallthru
        _
      %p121 = scmp.le.s32.totalorder 1, %s13
      %p122 = scmp.lt.s32.totalorder %s13, 3
      %p123 = pnand %p121, %p122
      %p124 = pneg %p123
      // Predicated region
      $region21: #{chomp1d.1} parent=5 // pred_check
        _
      $region22: #{chomp1d.1} parent=5 // pred_check_branch
        %126 = sbr.rel (%p123) target = $region24
      $region23: #{chomp1d.1} parent=5 // pred_region
        %s127 = ssub.s32 %s13, 1
        %s128 = sand.u32 %s40, 1
        %s129 = scalar_lea.sflag [#allocation3], %s128
        %s130 = sand.u32 %s40, 1
        %s131 = smul.addr %s130, 16
        %s132 = scalar_lea.vmem [#allocation2], %s131
        // Predicated region
        $region25: #{chomp1d.1} parent=23 // pred_check
          %p133 = pneg %p53
        $region26: #{chomp1d.1} parent=23 // pred_check_branch
          %135 = sbr.rel (%p133) target = $region28
        $region27: #{chomp1d.1} parent=23 // pred_region
          %136 = dma.done %s129, 256
        $region28: #{chomp1d.1} parent=23 // pred_fallthru
          _
        %s137 = sand.u32 %s40, 1
        %s138 = scalar_lea.sflag [#allocation3], %s137
        %s139 = sand.u32 %s40, 1
        %s140 = smul.addr %s139, 16
        %s141 = scalar_lea.vmem [#allocation2], %s140
        %p142 = pneg %p53
        %p143 = pneg %p50
        %p144 = pneg %p81
        %p145 = pneg %p78
        %s146 = sand.u32 %s68, 1
        %s147 = scalar_lea.sflag [#allocation4], %s146
        %s148 = sand.u32 %s68, 1
        %s149 = smul.addr %s148, 16
        %s150 = scalar_lea.vmem [#allocation5], %s149
        %s151 = smul.u32 2, %s23
        %s152 = smul.u32 2, %s23
        %v153 = vld [vmem:[%s132] sm:$0xff]
        %v154 = vld [vmem:[%s132 + $0x8] sm:$0xff]
        %155 = vst [vmem:[%s150] sm:$0xff] %v153
        %156 = vst [vmem:[%s150 + $0x8] sm:$0xff] %v154
        %s157 = sand.u32 %s68, 1
        %s158 = scalar_lea.sflag [#allocation4], %s157
        %s159 = sand.u32 %s68, 1
        %s160 = smul.addr %s159, 16
        %s161 = scalar_lea.vmem [#allocation5], %s160
        // Predicated region
        $region29: #{chomp1d.1} parent=23 // pred_check
          %p162 = pneg %p78
        $region30: #{chomp1d.1} parent=23 // pred_check_branch
          %164 = sbr.rel (%p162) target = $region32
        $region31: #{chomp1d.1} parent=23 // pred_region
          %s165 = smul.u32 2, %s23
          %s167 = ssub.s32 256, 256
          %168 = vsyncadd %s158, %s167
          %s169 = smul.addr %s22, 2
          %s170 = sadd.s32 %s165, %s169
          %s171 = smul.addr %s170, 128
          %s172 = scalar_lea.hbm %s1, %s171
          %s174 = sshll.u32 %s161, 4
          %s175 = int_to_ptr.vmem [resolvable:$true] %s174
          %177 = dma.vmem_to_hbm [thread:$0]  %s175, 256, %s172, %s158
        $region32: #{chomp1d.1} parent=23 // pred_fallthru
          _
      $region24: #{chomp1d.1} parent=5 // pred_fallthru
        _
      %p178 = scmp.le.s32.totalorder 2, %s13
      // Predicated region
      $region33: #{chomp1d.1} parent=5 // pred_check
        %p179 = pneg %p178
      $region34: #{chomp1d.1} parent=5 // pred_check_branch
        %181 = sbr.rel (%p179) target = $region36
      $region35: #{chomp1d.1} parent=5 // pred_region
        %s182 = ssub.s32 %s13, 2
        // Predicated region
        $region37: #{chomp1d.1} parent=35 // pred_check
          %p183 = pneg %p84
        $region38: #{chomp1d.1} parent=35 // pred_check_branch
          %185 = sbr.rel (%p183) target = $region40
        $region39: #{chomp1d.1} parent=35 // pred_region
          %s186 = sand.u32 %s69, 1
          %s187 = scalar_lea.sflag [#allocation4], %s186
          %s188 = sand.u32 %s69, 1
          %s189 = smul.addr %s188, 16
          %s190 = scalar_lea.vmem [#allocation5], %s189
          %191 = dma.done %s187, 256
        $region40: #{chomp1d.1} parent=35 // pred_fallthru
          _
      $region36: #{chomp1d.1} parent=5 // pred_fallthru
        _
    $region6: #{chomp1d.1} parent=1 // loop_footer
      %s17 = sadd.s32 1, %s13
    $region7: #{chomp1d.1} parent=1 // loop_footer_branch
      %12 = sbr.rel target = $region3
    $region8: #{chomp1d.1} parent=1 // loop_exit
      _
    %192 = vsyncpa [#allocation3], 1
    %s193 = scalar_lea.sflag [#allocation3], 1
    %194 = vsyncpa %s193, 1
    %195 = vsyncpa [#allocation4], 1
    %s196 = scalar_lea.sflag [#allocation4], 1
    %197 = vsyncpa %s196, 1

</llo_original>
